<compile_context>
chip_gen: v5e
topology: v5e:2x2
jax: 0.10.0
libtpu: 0.0.40
codegen_flags: <defaults>
</compile_context>

<pallas_src>
import jax
import jax.numpy as jnp
from jax.experimental import pallas as pl
from jax.experimental.pallas import tpu as pltpu

# Fixed activation weights (from the PyTorch module's __init__).
W_TANH = 0.3
W_RELU = 0.1
W_SIGMOID = 0.15
W_SIN = 0.25
W_SWISH = 0.1
W_LRELU = 0.1
LRELU_SLOPE = 0.1

# Widest lane dim (multiple of 128) that divides n exactly.
_LANE_CANDIDATES = (2048, 1024, 512, 256, 128)


def _tpu_vmem_bytes():
    try:
        return int(pltpu.get_tpu_info().vmem_capacity_bytes)
    except Exception:
        return 64 << 20          # conservative: v7x per-TC VMEM


_VMEM_PHYS = _tpu_vmem_bytes()
# ~8 MiB f32 blocks on 128-MiB-VMEM parts (v5e/v6e), ~4 MiB on 64-MiB parts (v7x).
_BLOCK_BYTES = (8 << 20) if _VMEM_PHYS >= (128 << 20) else (4 << 20)
_TARGET_BLOCK_ELEMS = _BLOCK_BYTES // 4
# in + out, double-buffered = ~4 blocks live; leave headroom under physical VMEM.
_VMEM_LIMIT_BYTES = int(min(6 * _BLOCK_BYTES, (_VMEM_PHYS * 3) // 4))


def weighted_activation_kernel(x_ref, o_ref):
    x = x_ref[...].astype(jnp.float32)   # compute in f32 (HBM bytes unchanged)

    # tanh / sigmoid via native EUP transcendentals (separate VLIW slot);
    # sigmoid(x) = 0.5 * (1 + tanh(x / 2)) is an exact identity.
    t = jnp.tanh(x)
    sig = 0.5 * (jnp.tanh(0.5 * x) + 1.0)
    s = jnp.sin(x)

    # W_RELU*relu(x) + W_LRELU*leaky_relu(x) folded into one select * x.
    lin = x * jnp.where(x >= 0.0, W_RELU + W_LRELU, W_LRELU * LRELU_SLOPE)
    # W_SIGMOID*sig + W_SWISH*(x*sig) = sig * (W_SIGMOID + W_SWISH*x).
    result = W_TANH * t + W_SIN * s + sig * (W_SIGMOID + W_SWISH * x) + lin
    o_ref[...] = result.astype(o_ref.dtype)


def _pick_lane(n):
    for lane in _LANE_CANDIDATES:
        if n % lane == 0:
            return lane
    return None


def _sublane_multiple(dtype):
    """Minimum second-to-last tile granularity for the dtype's packing."""
    bits = jnp.dtype(dtype).itemsize * 8
    if bits >= 32:
        return 8
    if bits == 16:
        return 16
    return 32


def weighted_activation(x: jax.Array) -> jax.Array:
    """Applies the fixed-weight activation blend elementwise to x (any shape)."""
    orig_shape = x.shape
    orig_dtype = x.dtype
    n = x.size
    if n == 0:
        return x
    x_flat = jnp.reshape(x, (-1,))

    lane = _pick_lane(n)
    pad = 0
    if lane is None:
        # Rare ragged case: n not a multiple of 128.  Pad up to the next
        # multiple of 128 (costs one extra HBM pass; only hit for odd sizes).
        lane = 128
        total = pl.cdiv(n, lane) * lane
        pad = total - n
        x_flat = jnp.pad(x_flat, (0, pad))
    else:
        total = n
    rows = total // lane

    sub = _sublane_multiple(orig_dtype)
    target_rows = max(sub, (_TARGET_BLOCK_ELEMS // lane) // sub * sub)

    if rows <= target_rows:
        # Whole array as one full-extent block (no (8,128) divisibility
        # requirement when block == full dims).
        tile_r = rows
        grid = (1,)
    else:
        # cdiv grid with a partially-masked boundary block: no divisor search,
        # no degenerate tiny tiles, no row padding.
        tile_r = target_rows
        grid = (pl.cdiv(rows, tile_r),)

    x2d = jnp.reshape(x_flat, (rows, lane))

    itemsize = jnp.dtype(orig_dtype).itemsize
    cost = pl.CostEstimate(
        flops=16 * total,
        transcendentals=3 * total,          # 2x tanh + sin per element
        bytes_accessed=2 * total * itemsize,
    )

    out2d = pl.pallas_call(
        weighted_activation_kernel,
        out_shape=jax.ShapeDtypeStruct((rows, lane), orig_dtype),
        grid_spec=pltpu.PrefetchScalarGridSpec(
            num_scalar_prefetch=0,
            grid=grid,
            in_specs=[pl.BlockSpec((tile_r, lane), lambda i: (i, 0))],
            out_specs=pl.BlockSpec((tile_r, lane), lambda i: (i, 0)),
        ),
        compiler_params=pltpu.CompilerParams(
            dimension_semantics=("parallel",),
            vmem_limit_bytes=_VMEM_LIMIT_BYTES,
        ),
        cost_estimate=cost,
    )(x2d)

    out_flat = jnp.reshape(out2d, (-1,))
    if pad:
        out_flat = out_flat[:n]
    return jnp.reshape(out_flat, orig_shape)


def weighted_activation_ref(x: jax.Array) -> jax.Array:
    """Pure-JAX reference matching the PyTorch forward exactly."""
    xf = x.astype(jnp.float32)
    result = (W_TANH * jnp.tanh(xf)
              + W_RELU * jnp.maximum(xf, 0.0)
              + W_SIGMOID * jax.nn.sigmoid(xf)
              + W_SIN * jnp.sin(xf)
              + W_SWISH * (xf * jax.nn.sigmoid(xf))
              + W_LRELU * jnp.where(xf >= 0.0, xf, LRELU_SLOPE * xf))
    return result.astype(x.dtype)


if __name__ == "__main__":
    key = jax.random.PRNGKey(0)
    # NCHW input, matching the PyTorch convention.
    x = jax.random.normal(key, (2, 4, 16, 16), dtype=jnp.float32)

    out = weighted_activation(x)
    out = jax.block_until_ready(out)

    ref = weighted_activation_ref(x)
    assert out.shape == x.shape and out.dtype == x.dtype
    assert jnp.allclose(out, ref, atol=1e-5, rtol=1e-5), "mismatch vs reference"

    print("KERNEL_OK")
</pallas_src>

<mosaic_0001>
module attributes {stable_mosaic.version = 11 : i64} {
  func.func @weighted_activation_kernel(%arg0: i32, %arg1: memref<1x2048xf32, #tpu.memory_space<vmem>>, %arg2: memref<1x2048xf32, #tpu.memory_space<vmem>>) attributes {dimension_semantics = [#tpu.dimension_semantics<parallel>], iteration_bounds = array<i64: 1>, scalar_prefetch = 0 : i64, scratch_operands = 0 : i64, tpu.core_type = #tpu.core_type<tc>, window_params = [{transform_indices = @transform_0, window_bounds = array<i64: 1, 2048>}, {transform_indices = @transform_1, window_bounds = array<i64: 1, 2048>}]} {
    %c0 = arith.constant 0 : index
    %c0_0 = arith.constant 0 : index
    %0 = vector.load %arg1[%c0, %c0_0] : memref<1x2048xf32, #tpu.memory_space<vmem>>, vector<1x2048xf32>
    %1 = math.tanh %0 : vector<1x2048xf32>
    %cst = arith.constant 5.000000e-01 : f32
    %2 = vector.broadcast %cst : f32 to vector<1x2048xf32>
    %3 = arith.mulf %2, %0 : vector<1x2048xf32>
    %4 = math.tanh %3 : vector<1x2048xf32>
    %cst_1 = arith.constant 1.000000e+00 : f32
    %5 = vector.broadcast %cst_1 : f32 to vector<1x2048xf32>
    %6 = arith.addf %4, %5 : vector<1x2048xf32>
    %cst_2 = arith.constant 5.000000e-01 : f32
    %7 = vector.broadcast %cst_2 : f32 to vector<1x2048xf32>
    %8 = arith.mulf %7, %6 : vector<1x2048xf32>
    %9 = math.sin %0 : vector<1x2048xf32>
    %cst_3 = arith.constant 0.000000e+00 : f32
    %10 = vector.broadcast %cst_3 : f32 to vector<1x2048xf32>
    %11 = arith.cmpf oge, %0, %10 : vector<1x2048xf32>
    %cst_4 = arith.constant 2.000000e-01 : f32
    %cst_5 = arith.constant 0.00999999977 : f32
    %12 = vector.broadcast %cst_4 : f32 to vector<1x2048xf32>
    %13 = vector.broadcast %cst_5 : f32 to vector<1x2048xf32>
    %14 = arith.select %11, %12, %13 : vector<1x2048xi1>, vector<1x2048xf32>
    %15 = arith.mulf %0, %14 : vector<1x2048xf32>
    %cst_6 = arith.constant 3.000000e-01 : f32
    %16 = vector.broadcast %cst_6 : f32 to vector<1x2048xf32>
    %17 = arith.mulf %16, %1 : vector<1x2048xf32>
    %cst_7 = arith.constant 2.500000e-01 : f32
    %18 = vector.broadcast %cst_7 : f32 to vector<1x2048xf32>
    %19 = arith.mulf %18, %9 : vector<1x2048xf32>
    %20 = arith.addf %17, %19 : vector<1x2048xf32>
    %cst_8 = arith.constant 1.000000e-01 : f32
    %21 = vector.broadcast %cst_8 : f32 to vector<1x2048xf32>
    %22 = arith.mulf %21, %0 : vector<1x2048xf32>
    %cst_9 = arith.constant 1.500000e-01 : f32
    %23 = vector.broadcast %cst_9 : f32 to vector<1x2048xf32>
    %24 = arith.addf %23, %22 : vector<1x2048xf32>
    %25 = arith.mulf %8, %24 : vector<1x2048xf32>
    %26 = arith.addf %20, %25 : vector<1x2048xf32>
    %27 = arith.addf %26, %15 : vector<1x2048xf32>
    %c0_10 = arith.constant 0 : index
    %c0_11 = arith.constant 0 : index
    %28 = vector.load %arg2[%c0_10, %c0_11] : memref<1x2048xf32, #tpu.memory_space<vmem>>, vector<1x2048xf32>
    tpu.vector_store %arg2[%c0_10, %c0_11], %27 {strides = array<i32>} : memref<1x2048xf32, #tpu.memory_space<vmem>>, vector<1x2048xf32>,
    return
  }
  func.func @transform_0(%arg0: i32) -> (i32, i32) {
    %c0_i32 = arith.constant 0 : i32
    %c0_i32_0 = arith.constant 0 : i32
    return %arg0, %c0_i32 : i32, i32
  }
  func.func @transform_1(%arg0: i32) -> (i32, i32) {
    %c0_i32 = arith.constant 0 : i32
    %c0_i32_0 = arith.constant 0 : i32
    return %arg0, %c0_i32 : i32, i32
  }
}

</mosaic_0001>

<llo_original>
// kernel: tpu_custom_call.1
$region0: #{tpu_custom_call.1}
  #allocation0 [shape = 'u32[]', space=smem, size = 0x4, offset = 0x4, fixed_abs, tag = 'smem constant byte address 0x4 - core index']
  #allocation1 [shape = 'u32[72,128]{1,0:T(1,128)}', space=vmem, size = 0x9000, scoped, tag = 'internal scratch']
  %s0 = inlined_call_operand.hbm [shape: f32[1,2048], index: 0, kind: input, shape index: {}]
  %s1 = inlined_call_operand.hbm [shape: f32[1,2048], index: 1, kind: output, shape index: {}]
  %s2 = sld [smem:[#allocation0]]
  $region18: #{tpu_custom_call.1} parent=0
    _
  %s4 = ssub.s32 1, %s2
  %s5 = scalar_select 0, %s4, %s2
  $region1: #{tpu_custom_call.1} parent=0
    #allocation2 [shape = 'u8[8192]{0}', space=vmem, size = 0x2000, scoped, tag = 'input window, operand 0, single buffered']
    #allocation3 [shape = 's32[1]{0}', space=sflag, size = 0x4, scoped, tag = 'scoped memory for tpu_custom_call.1']
    #allocation4 [shape = 's32[1]{0}', space=sflag, size = 0x4, scoped, tag = 'scoped memory for tpu_custom_call.1']
    #allocation5 [shape = 'u8[8192]{0}', space=vmem, size = 0x2000, scoped, tag = 'output window, operand 0, single buffered']
    %6 = vsyncpa [#allocation3], 0
    %7 = vsyncpa [#allocation4], 0
    // Predicated region
    $region2: #{tpu_custom_call.1} parent=1 // pred_check
      _
    $region3: #{tpu_custom_call.1} parent=1 // pred_check_branch
      %9 = sbr.rel (0) target = $region5
    $region4: #{tpu_custom_call.1} parent=1 // pred_region
      %11 = vsyncadd [#allocation3], 0
      %s13 = sshll.u32 %s0, 4
      %s14 = int_to_ptr.hbm [resolvable:$true] %s13
      %s15 = sshll.u32 [#allocation2], 4
      %s16 = int_to_ptr.vmem [resolvable:$true] %s15
      %18 = dma.hbm_to_vmem [thread:$0]  %s14, 256, %s16, [#allocation3]
    $region5: #{tpu_custom_call.1} parent=1 // pred_fallthru
      _
    // Predicated region
    $region6: #{tpu_custom_call.1} parent=1 // pred_check
      _
    $region7: #{tpu_custom_call.1} parent=1 // pred_check_branch
      %20 = sbr.rel (0) target = $region9
    $region8: #{tpu_custom_call.1} parent=1 // pred_region
      %22 = dma.done [#allocation3], 256
    $region9: #{tpu_custom_call.1} parent=1 // pred_fallthru
      _
    %v23 = vld [vmem:[#allocation2] sm:$0xff]
    %v24 = vld [vmem:[#allocation2 + $0x8] sm:$0xff]
    %v25 = vtanh.pop %v23
    %v26 = vtanh.pop %v24
    %v27 = vmul.f32 %v23, 0.5
    %v28 = vmul.f32 %v24, 0.5
    %v29 = vtanh.pop %v27
    %v30 = vtanh.pop %v28
    %v31 = vadd.f32 %v29, 1.0
    %v32 = vadd.f32 %v30, 1.0
    %v33 = vmul.f32 %v31, 0.5
    %v34 = vmul.f32 %v32, 0.5
    %v35 = vand.u32 2147483647, %v23
    %vm36 = vcmp.le.f32.partialorder %v35, 0.7853982
    %vm37 = vcmp.lt.s32.totalorder %v23, 0
    %v38 = vand.u32 %v23, 2139095040
    %v39 = vshrl.u32 %v38, 23
    %v40 = vsub.s32 %v39, 127
    %v41 = vand.u32 2147483647, %v23
    %v42 = vand.u32 %v41, 8388607
    %v43 = vor.u32 %v42, 8388608
    %v44 = vsub.s32 0, %v43
    %v45 = vadd.s32 %v40, 1
    %vm46 = vcmp.gt.s32.totalorder %v45, 0
    %v47 = vsel %vm46, %v45, 0
    %v48 = vshrl.u32 %v47, 5
    %v49 = vand.u32 %v47, 31
    %v50 = vsub.s32 32, %v49
    %v51 = vshrl.u32 683565275, %v50
    %v52 = vshll.u32 683565275, %v49
    %v53 = vshrl.u32 2475754826, %v50
    %v54 = vor.u32 %v52, %v53
    %v55 = vshll.u32 2475754826, %v49
    %v56 = vshrl.u32 2131351028, %v50
    %v57 = vor.u32 %v55, %v56
    %v58 = vshll.u32 2131351028, %v49
    %v59 = vshrl.u32 2102212464, %v50
    %v60 = vor.u32 %v58, %v59
    %v61 = vshll.u32 2102212464, %v49
    %v62 = vshrl.u32 920167782, %v50
    %v63 = vor.u32 %v61, %v62
    %v64 = vshll.u32 920167782, %v49
    %v65 = vshrl.u32 1326507024, %v50
    %v66 = vor.u32 %v64, %v65
    %vm67 = vcmp.lt.s32.totalorder %v48, 1
    %vm68 = vcmp.lt.s32.totalorder %v48, 2
    %vm69 = vcmp.lt.s32.totalorder %v48, 3
    %vm70 = vcmp.lt.s32.totalorder %v48, 4
    %v71 = vsel %vm67, %v51, %v54
    %v72 = vsel %vm70, %v60, 2102212464
    %v73 = vsel %vm69, %v57, %v72
    %v74 = vsel %vm68, %v71, %v73
    %v75 = vsel %vm67, %v54, %v57
    %v76 = vsel %vm70, %v63, 920167782
    %v77 = vsel %vm69, %v60, %v76
    %v78 = vsel %vm68, %v75, %v77
    %v79 = vsel %vm67, %v57, %v60
    %v80 = vsel %vm70, %v66, 1326507024
    %v81 = vsel %vm69, %v63, %v80
    %v82 = vsel %vm68, %v79, %v81
    %v83 = vshll.u32 %v43, 8
    %v84 = vand.u32 %v83, 65535
    %v85 = vshrl.u32 %v83, 16
    %v86 = vand.u32 %v82, 65535
    %v87 = vshrl.u32 %v82, 16
    %v88 = vmul.u32 %v84, %v86
    %v89 = vmul.u32 %v84, %v87
    %v90 = vmul.u32 %v85, %v86
    %v91 = vmul.u32 %v85, %v87
    %v92 = vshll.u32 %v89, 16
    %v93 = vshrl.u32 %v89, 16
    %v94 = vshll.u32 %v90, 16
    %v95 = vshrl.u32 %v90, 16
    %vm96 = vc.u32 %v88, %v92
    %v97 = vsel %vm96, 1, 0
    %v98 = vadd.s32 %v88, %v92
    %v99 = vadd.s32 %v91, %v97
    %vm100 = vc.u32 %v98, %v94
    %v101 = vsel %vm100, 1, 0
    %v102 = vadd.s32 %v98, %v94
    %v103 = vadd.s32 %v99, %v101
    %v104 = vadd.s32 %v103, %v93
    %v105 = vadd.s32 %v104, %v95
    %v106 = vand.u32 %v83, 65535
    %v107 = vshrl.u32 %v83, 16
    %v108 = vand.u32 %v78, 65535
    %v109 = vshrl.u32 %v78, 16
    %v110 = vmul.u32 %v106, %v108
    %v111 = vmul.u32 %v106, %v109
    %v112 = vmul.u32 %v107, %v108
    %v113 = vmul.u32 %v107, %v109
    %v114 = vshll.u32 %v111, 16
    %v115 = vshrl.u32 %v111, 16
    %v116 = vshll.u32 %v112, 16
    %v117 = vshrl.u32 %v112, 16
    %vm118 = vc.u32 %v110, %v114
    %v119 = vsel %vm118, 1, 0
    %v120 = vadd.s32 %v110, %v114
    %v121 = vadd.s32 %v113, %v119
    %vm122 = vc.u32 %v120, %v116
    %v123 = vsel %vm122, 1, 0
    %v124 = vadd.s32 %v120, %v116
    %v125 = vadd.s32 %v121, %v123
    %v126 = vadd.s32 %v125, %v115
    %v127 = vadd.s32 %v126, %v117
    %v128 = vmul.u32 %v83, %v74
    %v129 = vadd.s32 %v105, %v124
    %vm130 = vc.u32 %v105, %v124
    %v131 = vadd.s32 %v127, 1
    %v132 = vsel %vm130, %v131, %v127
    %v133 = vadd.s32 %v128, %v132
    %v134 = vadd.s32 %v133, 536870912
    %v135 = vshrl.u32 %v134, 30
    %v136 = vshll.u32 %v135, 30
    %v137 = vsub.s32 %v133, %v136
    %vm138 = vcmp.lt.s32.totalorder %v137, 0
    %v139 = vsub.s32 0, %v137
    %v140 = vsel %vm138, %v139, %v137
    %v141 = vclz %v140
    %v142 = vsub.s32 %v141, 2
    %vm143 = vcmp.gt.s32.totalorder 0, %v142
    %v144 = vsel %vm143, 0, %v142
    %v145 = vsub.s32 32, %v144
    %v146 = vshll.u32 %v137, %v144
    %v147 = vshrl.u32 %v129, %v145
    %v148 = vor.u32 %v146, %v147
    %v149 = vsub.s32 4294967266, %v144
    %v150 = vadd.s32 %v149, 127
    %v151 = vshll.u32 %v150, 23
    %v152 = vor.u32 4788187, %v151
    %v153 = vand.u32 2147483647, %v152
    %v155 = vcvt.s32.f32 %v148
    %v156 = vmul.f32 %v155, %v153
    %v157 = vxor.u32 %v156, 2147483648
    %v158 = vsel %vm37, %v157, %v156
    %v159 = vsub.s32 4, %v135
    %v160 = vsel %vm37, %v159, %v135
    %v161 = vsel %vm36, %v23, %v158
    %v162 = vsel %vm36, 0, %v160
    %v163 = vmul.f32 %v161, %v161
    %v164 = vmul.f32 %v163, -0.001358992
    %v165 = vadd.f32 %v164, 0.041655596
    %v166 = vmul.f32 %v163, %v165
    %v167 = vadd.f32 %v166, -0.4999988
    %v168 = vmul.f32 %v163, %v167
    %v169 = vadd.f32 1.0, %v168
    %v170 = vmul.f32 %v161, %v161
    %v171 = vmul.f32 %v170, -0.00019511016
    %v172 = vadd.f32 %v171, 0.008332121
    %v173 = vmul.f32 %v170, %v172
    %v174 = vadd.f32 %v173, -0.16666654
    %v175 = vmul.f32 %v170, %v174
    %v176 = vadd.f32 %v175, 1.0
    %v177 = vmul.f32 %v176, %v161
    %vm178 = vweird.f32 %v23
    %v179 = vadd.s32 %v162, 3
    %v180 = vand.u32 %v179, 3
    %vm181 = vcmp.lt.s32.totalorder %v180, 2
    %vm182 = vcmp.eq.s32.totalorder %v180, 0
    %v183 = vxor.u32 %v177, 2147483648
    %v184 = vsel %vm182, %v169, %v183
    %vm185 = vcmp.eq.s32.totalorder %v180, 2
    %v186 = vxor.u32 %v169, 2147483648
    %v187 = vsel %vm185, %v186, %v177
    %v188 = vsel %vm181, %v184, %v187
    %v189 = vsel %vm178, nan, %v188
    %v190 = vand.u32 2147483647, %v24
    %vm191 = vcmp.le.f32.partialorder %v190, 0.7853982
    %vm192 = vcmp.lt.s32.totalorder %v24, 0
    %v193 = vand.u32 %v24, 2139095040
    %v194 = vshrl.u32 %v193, 23
    %v195 = vsub.s32 %v194, 127
    %v196 = vand.u32 2147483647, %v24
    %v197 = vand.u32 %v196, 8388607
    %v198 = vor.u32 %v197, 8388608
    %v199 = vsub.s32 0, %v198
    %v200 = vadd.s32 %v195, 1
    %vm201 = vcmp.gt.s32.totalorder %v200, 0
    %v202 = vsel %vm201, %v200, 0
    %v203 = vshrl.u32 %v202, 5
    %v204 = vand.u32 %v202, 31
    %v205 = vsub.s32 32, %v204
    %v206 = vshrl.u32 683565275, %v205
    %v207 = vshll.u32 683565275, %v204
    %v208 = vshrl.u32 2475754826, %v205
    %v209 = vor.u32 %v207, %v208
    %v210 = vshll.u32 2475754826, %v204
    %v211 = vshrl.u32 2131351028, %v205
    %v212 = vor.u32 %v210, %v211
    %v213 = vshll.u32 2131351028, %v204
    %v214 = vshrl.u32 2102212464, %v205
    %v215 = vor.u32 %v213, %v214
    %v216 = vshll.u32 2102212464, %v204
    %v217 = vshrl.u32 920167782, %v205
    %v218 = vor.u32 %v216, %v217
    %v219 = vshll.u32 920167782, %v204
    %v220 = vshrl.u32 1326507024, %v205
    %v221 = vor.u32 %v219, %v220
    %vm222 = vcmp.lt.s32.totalorder %v203, 1
    %vm223 = vcmp.lt.s32.totalorder %v203, 2
    %vm224 = vcmp.lt.s32.totalorder %v203, 3
    %vm225 = vcmp.lt.s32.totalorder %v203, 4
    %v226 = vsel %vm222, %v206, %v209
    %v227 = vsel %vm225, %v215, 2102212464
    %v228 = vsel %vm224, %v212, %v227
    %v229 = vsel %vm223, %v226, %v228
    %v230 = vsel %vm222, %v209, %v212
    %v231 = vsel %vm225, %v218, 920167782
    %v232 = vsel %vm224, %v215, %v231
    %v233 = vsel %vm223, %v230, %v232
    %v234 = vsel %vm222, %v212, %v215
    %v235 = vsel %vm225, %v221, 1326507024
    %v236 = vsel %vm224, %v218, %v235
    %v237 = vsel %vm223, %v234, %v236
    %v238 = vshll.u32 %v198, 8
    %v239 = vand.u32 %v238, 65535
    %v240 = vshrl.u32 %v238, 16
    %v241 = vand.u32 %v237, 65535
    %v242 = vshrl.u32 %v237, 16
    %v243 = vmul.u32 %v239, %v241
    %v244 = vmul.u32 %v239, %v242
    %v245 = vmul.u32 %v240, %v241
    %v246 = vmul.u32 %v240, %v242
    %v247 = vshll.u32 %v244, 16
    %v248 = vshrl.u32 %v244, 16
    %v249 = vshll.u32 %v245, 16
    %v250 = vshrl.u32 %v245, 16
    %vm251 = vc.u32 %v243, %v247
    %v252 = vsel %vm251, 1, 0
    %v253 = vadd.s32 %v243, %v247
    %v254 = vadd.s32 %v246, %v252
    %vm255 = vc.u32 %v253, %v249
    %v256 = vsel %vm255, 1, 0
    %v257 = vadd.s32 %v253, %v249
    %v258 = vadd.s32 %v254, %v256
    %v259 = vadd.s32 %v258, %v248
    %v260 = vadd.s32 %v259, %v250
    %v261 = vand.u32 %v238, 65535
    %v262 = vshrl.u32 %v238, 16
    %v263 = vand.u32 %v233, 65535
    %v264 = vshrl.u32 %v233, 16
    %v265 = vmul.u32 %v261, %v263
    %v266 = vmul.u32 %v261, %v264
    %v267 = vmul.u32 %v262, %v263
    %v268 = vmul.u32 %v262, %v264
    %v269 = vshll.u32 %v266, 16
    %v270 = vshrl.u32 %v266, 16
    %v271 = vshll.u32 %v267, 16
    %v272 = vshrl.u32 %v267, 16
    %vm273 = vc.u32 %v265, %v269
    %v274 = vsel %vm273, 1, 0
    %v275 = vadd.s32 %v265, %v269
    %v276 = vadd.s32 %v268, %v274
    %vm277 = vc.u32 %v275, %v271
    %v278 = vsel %vm277, 1, 0
    %v279 = vadd.s32 %v275, %v271
    %v280 = vadd.s32 %v276, %v278
    %v281 = vadd.s32 %v280, %v270
    %v282 = vadd.s32 %v281, %v272
    %v283 = vmul.u32 %v238, %v229
    %v284 = vadd.s32 %v260, %v279
    %vm285 = vc.u32 %v260, %v279
    %v286 = vadd.s32 %v282, 1
    %v287 = vsel %vm285, %v286, %v282
    %v288 = vadd.s32 %v283, %v287
    %v289 = vadd.s32 %v288, 536870912
    %v290 = vshrl.u32 %v289, 30
    %v291 = vshll.u32 %v290, 30
    %v292 = vsub.s32 %v288, %v291
    %vm293 = vcmp.lt.s32.totalorder %v292, 0
    %v294 = vsub.s32 0, %v292
    %v295 = vsel %vm293, %v294, %v292
    %v296 = vclz %v295
    %v297 = vsub.s32 %v296, 2
    %vm298 = vcmp.gt.s32.totalorder 0, %v297
    %v299 = vsel %vm298, 0, %v297
    %v300 = vsub.s32 32, %v299
    %v301 = vshll.u32 %v292, %v299
    %v302 = vshrl.u32 %v284, %v300
    %v303 = vor.u32 %v301, %v302
    %v304 = vsub.s32 4294967266, %v299
    %v305 = vadd.s32 %v304, 127
    %v306 = vshll.u32 %v305, 23
    %v307 = vor.u32 4788187, %v306
    %v308 = vand.u32 2147483647, %v307
    %v310 = vcvt.s32.f32 %v303
    %v311 = vmul.f32 %v310, %v308
    %v312 = vxor.u32 %v311, 2147483648
    %v313 = vsel %vm192, %v312, %v311
    %v314 = vsub.s32 4, %v290
    %v315 = vsel %vm192, %v314, %v290
    %v316 = vsel %vm191, %v24, %v313
    %v317 = vsel %vm191, 0, %v315
    %v318 = vmul.f32 %v316, %v316
    %v319 = vmul.f32 %v318, -0.001358992
    %v320 = vadd.f32 %v319, 0.041655596
    %v321 = vmul.f32 %v318, %v320
    %v322 = vadd.f32 %v321, -0.4999988
    %v323 = vmul.f32 %v318, %v322
    %v324 = vadd.f32 1.0, %v323
    %v325 = vmul.f32 %v316, %v316
    %v326 = vmul.f32 %v325, -0.00019511016
    %v327 = vadd.f32 %v326, 0.008332121
    %v328 = vmul.f32 %v325, %v327
    %v329 = vadd.f32 %v328, -0.16666654
    %v330 = vmul.f32 %v325, %v329
    %v331 = vadd.f32 %v330, 1.0
    %v332 = vmul.f32 %v331, %v316
    %vm333 = vweird.f32 %v24
    %v334 = vadd.s32 %v317, 3
    %v335 = vand.u32 %v334, 3
    %vm336 = vcmp.lt.s32.totalorder %v335, 2
    %vm337 = vcmp.eq.s32.totalorder %v335, 0
    %v338 = vxor.u32 %v332, 2147483648
    %v339 = vsel %vm337, %v324, %v338
    %vm340 = vcmp.eq.s32.totalorder %v335, 2
    %v341 = vxor.u32 %v324, 2147483648
    %v342 = vsel %vm340, %v341, %v332
    %v343 = vsel %vm336, %v339, %v342
    %v344 = vsel %vm333, nan, %v343
    %vm345 = vcmp.ge.f32.partialorder %v23, 0.0
    %vm346 = vcmp.ge.f32.partialorder %v24, 0.0
    %v347 = vsel %vm345, 0.2, 0.01
    %v348 = vsel %vm346, 0.2, 0.01
    %v349 = vmul.f32 %v23, %v347
    %v350 = vmul.f32 %v24, %v348
    %v351 = vmul.f32 %v25, 0.3
    %v352 = vmul.f32 %v26, 0.3
    %v353 = vmul.f32 %v189, 0.25
    %v354 = vmul.f32 %v344, 0.25
    %v355 = vadd.f32 %v351, %v353
    %v356 = vadd.f32 %v352, %v354
    %v357 = vmul.f32 %v23, 0.1
    %v358 = vmul.f32 %v24, 0.1
    %v359 = vadd.f32 %v357, 0.15
    %v360 = vadd.f32 %v358, 0.15
    %v361 = vmul.f32 %v33, %v359
    %v362 = vmul.f32 %v34, %v360
    %v363 = vadd.f32 %v355, %v361
    %v364 = vadd.f32 %v356, %v362
    %v365 = vadd.f32 %v363, %v349
    %v366 = vadd.f32 %v364, %v350
    %367 = vst [vmem:[#allocation5] sm:$0xff] %v365
    %368 = vst [vmem:[#allocation5 + $0x8] sm:$0xff] %v366
    // Predicated region
    $region10: #{tpu_custom_call.1} parent=1 // pred_check
      _
    $region11: #{tpu_custom_call.1} parent=1 // pred_check_branch
      %370 = sbr.rel (0) target = $region13
    $region12: #{tpu_custom_call.1} parent=1 // pred_region
      %372 = vsyncadd [#allocation4], 0
      %s374 = sshll.u32 [#allocation5], 4
      %s375 = int_to_ptr.vmem [resolvable:$true] %s374
      %s376 = sshll.u32 %s1, 4
      %s377 = int_to_ptr.hbm [resolvable:$true] %s376
      %379 = dma.vmem_to_hbm [thread:$0]  %s375, 256, %s377, [#allocation4]
    $region13: #{tpu_custom_call.1} parent=1 // pred_fallthru
      _
    // Predicated region
    $region14: #{tpu_custom_call.1} parent=1 // pred_check
      _
    $region15: #{tpu_custom_call.1} parent=1 // pred_check_branch
      %381 = sbr.rel (0) target = $region17
    $region16: #{tpu_custom_call.1} parent=1 // pred_region
      %383 = dma.done [#allocation4], 256
    $region17: #{tpu_custom_call.1} parent=1 // pred_fallthru
      _
    %384 = vsyncpa [#allocation3], 1
    %385 = vsyncpa [#allocation4], 1

</llo_original>
